<compile_context>
chip_gen: v7x
topology: tpu7x:2x2x1
jax: 0.10.0
libtpu: 0.0.40
codegen_flags: <defaults>
</compile_context>

<pallas_src>
import functools

import jax
import jax.numpy as jnp
from jax.experimental import pallas as pl
from jax.experimental.pallas import tpu as pltpu


def _gumbel_encoder_kernel(x_ref, w_enc_ref, b_enc_ref, eg_ref, w_dec_ref, b_dec_ref,
                           out_ref, gmax_ref, *, tau, block_batch, seq_len, pack):
    """One grid step: block_batch batch elements x seq_len tokens (M = Bb*T rows)."""
    # ---- encode: logits = x @ W_enc + b_enc ------------------------------ (M, L)
    logits = jnp.dot(x_ref[...], w_enc_ref[...],
                     preferred_element_type=jnp.float32) + b_enc_ref[...]

    # ---- per-token softmax pieces (shared with the gumbel numerator) ----------
    m = jnp.max(logits, axis=-1, keepdims=True)                      # (M, 1)  XLU
    e_z = jnp.exp(logits - m)                                        # (M, L)  EUP exp #1
    row_sum = jnp.sum(e_z, axis=-1, keepdims=True)                   # (M, 1)  XLU

    if tau == 1.0:
        # Reuse exp(z): numerator = softmax_p * exp(g)   (single full-tile exp).
        e_zt = e_z
        row_factor = 1.0 / row_sum                                   # (M, 1)
    else:
        # General tau: need exp(z / tau); per-row factor is row_sum ** (-1/tau).
        inv_tau = 1.0 / tau
        e_zt = jnp.exp((logits - m) * inv_tau)                       # (M, L)  EUP exp #2
        row_factor = jnp.exp(-inv_tau * jnp.log(row_sum))            # (M, 1)  cheap

    # Unnormalized gumbel-softmax numerator exp((log_softmax(logits) + g) / tau).
    # No per-batch max shift needed: e_zt <= 1 and row_factor <= 1, and
    # eg = exp(g / tau) is precomputed wrapper-side and bounded for sane tau.
    num = e_zt * eg_ref[...] * row_factor                            # (M, L)

    # ---- per-batch-element normalizer over the flattened (T, L) axis ----------
    num3 = num.reshape(block_batch, seq_len, -1)                     # (Bb, T, L)
    denom = jnp.sum(jnp.sum(num3, axis=-1, keepdims=True),
                    axis=1, keepdims=True)                           # (Bb, 1, 1)
    nmax = jnp.max(jnp.max(num3, axis=-1, keepdims=True),
                   axis=1, keepdims=True)                            # (Bb, 1, 1)
    inv_denom = 1.0 / denom   # exact; feeds max_gumbel_probs (keep approx off here)

    # ---- decode on the UNnormalized numerator; fold 1/denom + bias into the
    # (M, H) result instead of the (M, L) tile (8x fewer elementwise ops). ------
    out_un = jnp.dot(num, w_dec_ref[...],
                     preferred_element_type=jnp.float32)             # (M, H)
    out3 = out_un.reshape(block_batch, seq_len, -1) * inv_denom + b_dec_ref[...]

    rows = block_batch * seq_len
    hidden = out3.shape[-1]
    # pack > 1 repacks `pack` consecutive rows into one lane-dense 128-wide row
    # (sublane -> lane relayout); pack == 1 is a free leading-dim merge.
    out_ref[...] = out3.reshape(rows // pack, pack * hidden).astype(out_ref.dtype)

    # max gumbel prob over this step's batch elements.
    gmax_ref[...] = jnp.max(nmax * inv_denom, axis=0)                # (1, 1)


def _choose_block_batch(B, T, target_rows=1024):
    """Largest divisor Bb of B such that tm = Bb*T satisfies the (8,128) sublane
    rule (tm % 8 == 0, or Bb == B so the block covers the full row dim) and
    tm <= target_rows; falls back to the smallest valid divisor otherwise."""
    valid = [d for d in range(1, B + 1)
             if B % d == 0 and (d == B or (d * T) % 8 == 0)]
    fitting = [d for d in valid if d * T <= target_rows]
    return max(fitting) if fitting else min(valid)


def gumbel_encoder_forward(x, w_enc, b_enc, w_dec, b_dec, gumbel_noise, tau=1.0,
                           block_batch=None, target_rows=1024, noise_dtype=None,
                           pack_output=False, core_parallel=False):
    """Returns (out_vectors (B, T, H), max_gumbel_probs scalar).

    w_enc: (H, L), w_dec: (L, H) -- already transposed w.r.t. torch nn.Linear.
    gumbel_noise: (B, T, L) standard Gumbel(0,1) samples (torch draws these
    inside F.gumbel_softmax; here they are an explicit input for determinism).

    Tuning knobs (see perf notes at the top of the file):
      target_rows   -- rows (Bb*T) per grid step; sweep 512-2048.
      noise_dtype   -- jnp.bfloat16 halves the dominant HBM stream (v5e).
      pack_output   -- lane-dense repack of the H(<128)-wide output; enable
                       after verifying the in-kernel relayout is cheap.
      core_parallel -- CORE_PARALLEL grid axis for explicit 2-TC sharding on
                       v7x; lower target_rows so num_steps >= 2 in that case.
    """
    B, T, H = x.shape
    L = w_enc.shape[1]
    tau = float(tau)

    if block_batch is None:
        block_batch = _choose_block_batch(B, T, target_rows)
    assert B % block_batch == 0, "block_batch must divide B"
    num_steps = B // block_batch
    tm = block_batch * T
    assert num_steps == 1 or tm % 8 == 0, (
        "tm = block_batch*T must be a multiple of 8 (or a single grid step)")

    # Lane-dense output packing factor: `pack` consecutive rows per 128-lane row.
    pack = 1
    if pack_output and H < 128 and 128 % H == 0:
        p = 128 // H
        if tm % p == 0 and (num_steps == 1 or (tm // p) % 8 == 0):
            pack = p

    # Flatten wrapper-side so the kernel sees lane-dense 2-D slabs.
    x2 = x.reshape(B * T, H)
    # Fold 1/tau and the exp of the noise into input prep so the kernel runs
    # only ~one full-tile exp when tau == 1.  In a real pipeline this is free:
    # exp(Gumbel(u)) == -1/log(u) fuses into the sampler.  NOTE: for very small
    # tau, exp(g/tau) can overflow f32.
    eg2 = jnp.exp(gumbel_noise.reshape(B * T, L) * (1.0 / tau))
    if noise_dtype is not None:
        eg2 = eg2.astype(noise_dtype)

    kernel = functools.partial(_gumbel_encoder_kernel, tau=tau,
                               block_batch=block_batch, seq_len=T, pack=pack)

    cost = pl.CostEstimate(
        flops=2 * 2 * B * T * H * L,                        # two matmuls
        transcendentals=(1 if tau == 1.0 else 2) * B * T * L,
        bytes_accessed=(x2.size * x2.dtype.itemsize
                        + eg2.size * eg2.dtype.itemsize
                        + 4 * (w_enc.size + w_dec.size + b_enc.size + b_dec.size)
                        + B * T * H * x.dtype.itemsize),
    )

    dim_sem = (pltpu.CORE_PARALLEL,) if core_parallel else ("parallel",)

    out2, gmax = pl.pallas_call(
        kernel,
        out_shape=(
            jax.ShapeDtypeStruct((B * T // pack, pack * H), x.dtype),
            jax.ShapeDtypeStruct((num_steps, 1, 1), jnp.float32),
        ),
        grid=(num_steps,),
        in_specs=[
            pl.BlockSpec((tm, H), lambda i: (i, 0)),        # x slab          (Bb*T, H)
            pl.BlockSpec((H, L), lambda i: (0, 0)),         # w_enc           (resident)
            pl.BlockSpec((1, L), lambda i: (0, 0)),         # b_enc
            pl.BlockSpec((tm, L), lambda i: (i, 0)),        # exp(g/tau) slab (Bb*T, L)
            pl.BlockSpec((L, H), lambda i: (0, 0)),         # w_dec
            pl.BlockSpec((1, H), lambda i: (0, 0)),         # b_dec
        ],
        out_specs=(
            pl.BlockSpec((tm // pack, pack * H), lambda i: (i, 0)),   # out slab
            pl.BlockSpec((None, 1, 1), lambda i: (i, 0, 0)),          # per-step max prob
        ),
        compiler_params=pltpu.CompilerParams(dimension_semantics=dim_sem),
        cost_estimate=cost,
    )(x2, w_enc, b_enc, eg2, w_dec, b_dec)

    out = out2.reshape(B, T, H)      # row-major unpack of the (pack*H)-wide slab
    max_gumbel_probs = jnp.max(gmax)
    return out, max_gumbel_probs


# TODO(synk): the `return_code=True` branch (argmax over the log-softmax logits) is not
# wired into the kernel; it would be a trivial extra (tm, 1) argmax output.


if __name__ == "__main__":
    key = jax.random.PRNGKey(0)

    hidden_size, bits, tau = 32, 8, 1.0
    num_logits = 2 ** bits        # 256
    B, T = 2, 8

    k_x, k_we, k_be, k_wd, k_bd, k_g = jax.random.split(key, 6)

    x = jax.random.normal(k_x, (B, T, hidden_size), dtype=jnp.float32)

    # Deterministic parameter init matching nn.Linear's U(-1/sqrt(fan_in), 1/sqrt(fan_in)).
    lim_e = 1.0 / (hidden_size ** 0.5)
    w_enc = jax.random.uniform(k_we, (hidden_size, num_logits), jnp.float32, -lim_e, lim_e)
    b_enc = jax.random.uniform(k_be, (1, num_logits), jnp.float32, -lim_e, lim_e)
    lim_d = 1.0 / (num_logits ** 0.5)
    w_dec = jax.random.uniform(k_wd, (num_logits, hidden_size), jnp.float32, -lim_d, lim_d)
    b_dec = jax.random.uniform(k_bd, (1, hidden_size), jnp.float32, -lim_d, lim_d)

    # Gumbel noise sampled once in plain JAX (same role as torch's in-op sampling).
    gumbel_noise = jax.random.gumbel(k_g, (B, T, num_logits), dtype=jnp.float32)

    out, gmax = gumbel_encoder_forward(x, w_enc, b_enc, w_dec, b_dec, gumbel_noise, tau)
    out = jax.block_until_ready(out)
    gmax = jax.block_until_ready(gmax)

    # Pure-JAX reference (same math, same noise) for a correctness check.
    logits = jnp.einsum("bth,hl->btl", x, w_enc) + b_enc
    logp = jax.nn.log_softmax(logits, axis=-1)
    y = (logp + gumbel_noise) / tau
    gs = jax.nn.softmax(y.reshape(B, T * num_logits), axis=-1).reshape(B, T, num_logits)
    ref = jnp.einsum("btl,lh->bth", gs, w_dec) + b_dec
    ref_max = jnp.max(gs)

    assert out.shape == (B, T, hidden_size)
    assert jnp.allclose(out, ref, atol=1e-5, rtol=1e-5), "out_vectors mismatch"
    assert jnp.allclose(gmax, ref_max, atol=1e-5, rtol=1e-5), "max_gumbel_probs mismatch"

    print("KERNEL_OK")
</pallas_src>

<mosaic_0001>
module attributes {stable_mosaic.version = 11 : i64} {
  func.func @_gumbel_encoder_kernel(%arg0: i32, %arg1: memref<16x32xf32, #tpu.memory_space<vmem>>, %arg2: memref<32x256xf32, #tpu.memory_space<vmem>>, %arg3: memref<1x256xf32, #tpu.memory_space<vmem>>, %arg4: memref<16x256xf32, #tpu.memory_space<vmem>>, %arg5: memref<256x32xf32, #tpu.memory_space<vmem>>, %arg6: memref<1x32xf32, #tpu.memory_space<vmem>>, %arg7: memref<16x32xf32, #tpu.memory_space<vmem>>, %arg8: memref<1x1x1xf32, #tpu.memory_space<vmem>>) attributes {dimension_semantics = [#tpu.dimension_semantics<parallel>], iteration_bounds = array<i64: 1>, scalar_prefetch = 0 : i64, scratch_operands = 0 : i64, tpu.core_type = #tpu.core_type<tc>, window_params = [{transform_indices = @transform_0, window_bounds = array<i64: 16, 32>}, {pipeline_mode = #tpu.pipeline_mode<synchronous>, transform_indices = @transform_1, window_bounds = array<i64: 32, 256>}, {pipeline_mode = #tpu.pipeline_mode<synchronous>, transform_indices = @transform_2, window_bounds = array<i64: 1, 256>}, {transform_indices = @transform_3, window_bounds = array<i64: 16, 256>}, {pipeline_mode = #tpu.pipeline_mode<synchronous>, transform_indices = @transform_4, window_bounds = array<i64: 256, 32>}, {pipeline_mode = #tpu.pipeline_mode<synchronous>, transform_indices = @transform_5, window_bounds = array<i64: 1, 32>}, {transform_indices = @transform_6, window_bounds = array<i64: 16, 32>}, {transform_indices = @transform_7, window_bounds = array<i64: 1, 1, 1>}]} {
    %c0 = arith.constant 0 : index
    %c0_0 = arith.constant 0 : index
    %0 = vector.load %arg1[%c0, %c0_0] : memref<16x32xf32, #tpu.memory_space<vmem>>, vector<16x32xf32>
    %c0_1 = arith.constant 0 : index
    %c0_2 = arith.constant 0 : index
    %1 = vector.load %arg2[%c0_1, %c0_2] : memref<32x256xf32, #tpu.memory_space<vmem>>, vector<32x256xf32>
    %cst = arith.constant dense<0.000000e+00> : vector<16x256xf32>
    %2 = tpu.matmul %0, %1, %cst {dimension_numbers = #tpu.dot_dimension_numbers<[1], [0], [0], [1], [0, 0, 1, 1], [], []>} : vector<16x32xf32>, vector<32x256xf32>, vector<16x256xf32> -> vector<16x256xf32>
    %c0_3 = arith.constant 0 : index
    %c0_4 = arith.constant 0 : index
    %3 = vector.load %arg3[%c0_3, %c0_4] : memref<1x256xf32, #tpu.memory_space<vmem>>, vector<1x256xf32>
    %4 = vector.broadcast %3 : vector<1x256xf32> to vector<16x256xf32>
    %5 = arith.addf %2, %4 : vector<16x256xf32>
    %cst_5 = arith.constant dense<0xFF800000> : vector<16xf32>
    %6 = vector.multi_reduction <maximumf>, %5, %cst_5 [1] : vector<16x256xf32> to vector<16xf32>
    %7 = vector.shape_cast %6 : vector<16xf32> to vector<16x1xf32>
    %8 = vector.broadcast %7 : vector<16x1xf32> to vector<16x256xf32>
    %9 = arith.subf %5, %8 : vector<16x256xf32>
    %10 = math.exp %9 : vector<16x256xf32>
    %cst_6 = arith.constant dense<0.000000e+00> : vector<16xf32>
    %11 = vector.multi_reduction <add>, %10, %cst_6 [1] : vector<16x256xf32> to vector<16xf32>
    %12 = vector.shape_cast %11 : vector<16xf32> to vector<16x1xf32>
    %cst_7 = arith.constant 1.000000e+00 : f32
    %13 = vector.broadcast %cst_7 : f32 to vector<16x1xf32>
    %14 = arith.divf %13, %12 : vector<16x1xf32>
    %c0_8 = arith.constant 0 : index
    %c0_9 = arith.constant 0 : index
    %15 = vector.load %arg4[%c0_8, %c0_9] : memref<16x256xf32, #tpu.memory_space<vmem>>, vector<16x256xf32>
    %16 = arith.mulf %10, %15 : vector<16x256xf32>
    %17 = vector.broadcast %14 : vector<16x1xf32> to vector<16x256xf32>
    %18 = arith.mulf %16, %17 : vector<16x256xf32>
    %19 = vector.shape_cast %18 : vector<16x256xf32> to vector<2x8x256xf32>
    %cst_10 = arith.constant dense<0.000000e+00> : vector<2x8xf32>
    %20 = vector.multi_reduction <add>, %19, %cst_10 [2] : vector<2x8x256xf32> to vector<2x8xf32>
    %21 = vector.shape_cast %20 : vector<2x8xf32> to vector<2x8x1xf32>
    %cst_11 = arith.constant dense<0.000000e+00> : vector<2x1xf32>
    %22 = vector.multi_reduction <add>, %21, %cst_11 [1] : vector<2x8x1xf32> to vector<2x1xf32>
    %23 = vector.shape_cast %22 : vector<2x1xf32> to vector<2x1x1xf32>
    %cst_12 = arith.constant dense<0xFF800000> : vector<2x8xf32>
    %24 = vector.multi_reduction <maximumf>, %19, %cst_12 [2] : vector<2x8x256xf32> to vector<2x8xf32>
    %25 = vector.shape_cast %24 : vector<2x8xf32> to vector<2x8x1xf32>
    %cst_13 = arith.constant dense<0xFF800000> : vector<2x1xf32>
    %26 = vector.multi_reduction <maximumf>, %25, %cst_13 [1] : vector<2x8x1xf32> to vector<2x1xf32>
    %27 = vector.shape_cast %26 : vector<2x1xf32> to vector<2x1x1xf32>
    %cst_14 = arith.constant 1.000000e+00 : f32
    %28 = vector.broadcast %cst_14 : f32 to vector<2x1x1xf32>
    %29 = arith.divf %28, %23 : vector<2x1x1xf32>
    %c0_15 = arith.constant 0 : index
    %c0_16 = arith.constant 0 : index
    %30 = vector.load %arg5[%c0_15, %c0_16] : memref<256x32xf32, #tpu.memory_space<vmem>>, vector<256x32xf32>
    %cst_17 = arith.constant dense<0.000000e+00> : vector<16x32xf32>
    %31 = tpu.matmul %18, %30, %cst_17 {dimension_numbers = #tpu.dot_dimension_numbers<[1], [0], [0], [1], [0, 0, 1, 1], [], []>} : vector<16x256xf32>, vector<256x32xf32>, vector<16x32xf32> -> vector<16x32xf32>
    %32 = vector.shape_cast %31 : vector<16x32xf32> to vector<2x8x32xf32>
    %33 = vector.broadcast %29 : vector<2x1x1xf32> to vector<2x8x32xf32>
    %34 = arith.mulf %32, %33 : vector<2x8x32xf32>
    %c0_18 = arith.constant 0 : index
    %c0_19 = arith.constant 0 : index
    %35 = vector.load %arg6[%c0_18, %c0_19] : memref<1x32xf32, #tpu.memory_space<vmem>>, vector<1x32xf32>
    %36 = vector.shape_cast %35 : vector<1x32xf32> to vector<1x1x32xf32>
    %37 = vector.broadcast %36 : vector<1x1x32xf32> to vector<2x8x32xf32>
    %38 = arith.addf %34, %37 : vector<2x8x32xf32>
    %39 = vector.shape_cast %38 : vector<2x8x32xf32> to vector<16x32xf32>
    %c0_20 = arith.constant 0 : index
    %c0_21 = arith.constant 0 : index
    %40 = vector.load %arg7[%c0_20, %c0_21] : memref<16x32xf32, #tpu.memory_space<vmem>>, vector<16x32xf32>
    tpu.vector_store %arg7[%c0_20, %c0_21], %39 {strides = array<i32>} : memref<16x32xf32, #tpu.memory_space<vmem>>, vector<16x32xf32>,
    %41 = arith.mulf %27, %29 : vector<2x1x1xf32>
    %cst_22 = arith.constant dense<0xFF800000> : vector<1x1xf32>
    %42 = vector.multi_reduction <maximumf>, %41, %cst_22 [0] : vector<2x1x1xf32> to vector<1x1xf32>
    %c0_23 = arith.constant 0 : index
    %c0_24 = arith.constant 0 : index
    %c0_25 = arith.constant 0 : index
    %43 = vector.load %arg8[%c0_23, %c0_24, %c0_25] : memref<1x1x1xf32, #tpu.memory_space<vmem>>, vector<1x1x1xf32>
    %44 = vector.shape_cast %43 : vector<1x1x1xf32> to vector<1x1xf32>
    %45 = vector.shape_cast %42 : vector<1x1xf32> to vector<1x1x1xf32>
    tpu.vector_store %arg8[%c0_23, %c0_24, %c0_25], %45 {strides = array<i32>} : memref<1x1x1xf32, #tpu.memory_space<vmem>>, vector<1x1x1xf32>,
    return
  }
  func.func @transform_0(%arg0: i32) -> (i32, i32) {
    %c0_i32 = arith.constant 0 : i32
    %c0_i32_0 = arith.constant 0 : i32
    return %arg0, %c0_i32 : i32, i32
  }
  func.func @transform_1(%arg0: i32) -> (i32, i32) {
    %c0_i32 = arith.constant 0 : i32
    %c0_i32_0 = arith.constant 0 : i32
    %c0_i32_1 = arith.constant 0 : i32
    return %c0_i32, %c0_i32_0 : i32, i32
  }
  func.func @transform_2(%arg0: i32) -> (i32, i32) {
    %c0_i32 = arith.constant 0 : i32
    %c0_i32_0 = arith.constant 0 : i32
    %c0_i32_1 = arith.constant 0 : i32
    return %c0_i32, %c0_i32_0 : i32, i32
  }
  func.func @transform_3(%arg0: i32) -> (i32, i32) {
    %c0_i32 = arith.constant 0 : i32
    %c0_i32_0 = arith.constant 0 : i32
    return %arg0, %c0_i32 : i32, i32
  }
  func.func @transform_4(%arg0: i32) -> (i32, i32) {
    %c0_i32 = arith.constant 0 : i32
    %c0_i32_0 = arith.constant 0 : i32
    %c0_i32_1 = arith.constant 0 : i32
    return %c0_i32, %c0_i32_0 : i32, i32
  }
  func.func @transform_5(%arg0: i32) -> (i32, i32) {
    %c0_i32 = arith.constant 0 : i32
    %c0_i32_0 = arith.constant 0 : i32
    %c0_i32_1 = arith.constant 0 : i32
    return %c0_i32, %c0_i32_0 : i32, i32
  }
  func.func @transform_6(%arg0: i32) -> (i32, i32) {
    %c0_i32 = arith.constant 0 : i32
    %c0_i32_0 = arith.constant 0 : i32
    return %arg0, %c0_i32 : i32, i32
  }
  func.func @transform_7(%arg0: i32) -> (i32, i32, i32) {
    %c0_i32 = arith.constant 0 : i32
    %c0_i32_0 = arith.constant 0 : i32
    %c0_i32_1 = arith.constant 0 : i32
    return %arg0, %c0_i32, %c0_i32_0 : i32, i32, i32
  }
}

</mosaic_0001>

<llo_original>
// kernel: tpu_custom_call.1
$region0: #{tpu_custom_call.1}
  #allocation0 [shape = 'u32[]', space=smem, size = 0x4, offset = 0x4, fixed_abs, tag = 'smem constant byte address 0x4 - core index']
  #allocation1 [shape = 'u32[144,128]{1,0:T(1,128)}', space=vmem, size = 0x12000, scoped, tag = 'internal scratch']
  %s0 = inlined_call_operand.vmem [shape: f32[16,32], index: 0, kind: input, shape index: {}]
  %s1 = inlined_call_operand.vmem [shape: f32[32,256], index: 1, kind: input, shape index: {}]
  %s2 = inlined_call_operand.vmem [shape: f32[1,256], index: 2, kind: input, shape index: {}]
  %s3 = inlined_call_operand.vmem [shape: f32[16,256], index: 3, kind: input, shape index: {}]
  %s4 = inlined_call_operand.vmem [shape: f32[256,32], index: 4, kind: input, shape index: {}]
  %s5 = inlined_call_operand.vmem [shape: f32[1,32], index: 5, kind: input, shape index: {}]
  %s6 = inlined_call_operand.hbm [shape: f32[16,32], index: 6, kind: output, shape index: {0}]
  %s7 = inlined_call_operand.hbm [shape: f32[1,1,1], index: 7, kind: output, shape index: {1}]
  %8 = xla_tuple %s6, %s7
  %s9 = sld [smem:[#allocation0]]
  $region42: #{tpu_custom_call.1} parent=0
    _
  %s11 = ssub.s32 1, %s9
  %s12 = scalar_select 0, %s11, %s9
  $region1: #{tpu_custom_call.1} parent=0
    #allocation2 [shape = 'u8[8192]{0}', space=vmem, size = 0x2000, scoped, tag = 'output window, operand 0, single buffered']
    #allocation3 [shape = 's32[1]{0}', space=sflag, size = 0x4, scoped, tag = 'scoped memory for tpu_custom_call.1']
    #allocation4 [shape = 'u8[512]{0}', space=vmem, size = 0x400, scoped, tag = 'output window, operand 1, single buffered']
    #allocation5 [shape = 's32[1]{0}', space=sflag, size = 0x4, scoped, tag = 'scoped memory for tpu_custom_call.1']
    %13 = vsyncpa [#allocation3], 0
    %14 = vsyncpa [#allocation5], 0
    // Predicated region
    $region2: #{tpu_custom_call.1} parent=1 // pred_check
      _
    $region3: #{tpu_custom_call.1} parent=1 // pred_check_branch
      %16 = sbr.rel (0) target = $region5
    $region4: #{tpu_custom_call.1} parent=1 // pred_region
      _
    $region5: #{tpu_custom_call.1} parent=1 // pred_fallthru
      _
    // Predicated region
    $region6: #{tpu_custom_call.1} parent=1 // pred_check
      _
    $region7: #{tpu_custom_call.1} parent=1 // pred_check_branch
      %18 = sbr.rel (0) target = $region9
    $region8: #{tpu_custom_call.1} parent=1 // pred_region
      _
    $region9: #{tpu_custom_call.1} parent=1 // pred_fallthru
      _
    // Predicated region
    $region10: #{tpu_custom_call.1} parent=1 // pred_check
      _
    $region11: #{tpu_custom_call.1} parent=1 // pred_check_branch
      %20 = sbr.rel (0) target = $region13
    $region12: #{tpu_custom_call.1} parent=1 // pred_region
      _
    $region13: #{tpu_custom_call.1} parent=1 // pred_fallthru
      _
    // Predicated region
    $region14: #{tpu_custom_call.1} parent=1 // pred_check
      _
    $region15: #{tpu_custom_call.1} parent=1 // pred_check_branch
      %22 = sbr.rel (0) target = $region17
    $region16: #{tpu_custom_call.1} parent=1 // pred_region
      _
    $region17: #{tpu_custom_call.1} parent=1 // pred_fallthru
      _
    // Predicated region
    $region18: #{tpu_custom_call.1} parent=1 // pred_check
      _
    $region19: #{tpu_custom_call.1} parent=1 // pred_check_branch
      %24 = sbr.rel (0) target = $region21
    $region20: #{tpu_custom_call.1} parent=1 // pred_region
      _
    $region21: #{tpu_custom_call.1} parent=1 // pred_fallthru
      _
    // Predicated region
    $region22: #{tpu_custom_call.1} parent=1 // pred_check
      _
    $region23: #{tpu_custom_call.1} parent=1 // pred_check_branch
      %26 = sbr.rel (0) target = $region25
    $region24: #{tpu_custom_call.1} parent=1 // pred_region
      _
    $region25: #{tpu_custom_call.1} parent=1 // pred_fallthru
      _
    %v27 = vld [vmem:[%s0] sm:$0xff]
    %v28 = vld [vmem:[%s0 + $0x8] sm:$0xff]
    %v29 = vld [vmem:[%s1] sm:$0xff]
    %v30 = vld [vmem:[%s1 + $0x8] sm:$0xff]
    %v31 = vld [vmem:[%s1 + $0x10] sm:$0xff]
    %v32 = vld [vmem:[%s1 + $0x18] sm:$0xff]
    %v33 = vld [vmem:[%s1 + $0x20] sm:$0xff]
    %v34 = vld [vmem:[%s1 + $0x28] sm:$0xff]
    %v35 = vld [vmem:[%s1 + $0x30] sm:$0xff]
    %v36 = vld [vmem:[%s1 + $0x38] sm:$0xff]
    %v37 = vld [vmem:[%s2] sm:$0x3]
    %v39 = vlaneseq
    %v40 = vshrl.u32 %v39, 7
    %v41 = vsub.s32 0, %v40
    %v42 = vrot.slane %v37, %v41
    %v43 = vlaneseq
    %v44 = vshrl.u32 %v43, 7
    %v45 = vsub.s32 1, %v44
    %v46 = vrot.slane %v37, %v45
    %vm49 = vcmask 261120
    %v51 = vsel %vm49, %v27, 0
    %v54 = vsel %vm49, %v28, 0
    %56 = vmatprep.subr.mxu0 %v30
    %57 = vmatpush1.msra.mxu0 %v29
    %58 = vmatprep.subr.mxu0 %v32
    %59 = vmatpush1.msra.mxu0 %v31
    %60 = vmatprep.subr.mxu0 %v34
    %61 = vmatpush1.msra.mxu0 %v33
    %62 = vmatprep.subr.mxu0 %v36
    %63 = vmatpush1.msra.mxu0 %v35
    %64 = vmatprep.subr.mxu0 0.0
    %65 = vmatpush1.msra.mxu0 0.0
    %66 = vmatprep.subr.mxu0 0.0
    %67 = vmatpush1.msra.mxu0 0.0
    %68 = vmatprep.subr.mxu0 0.0
    %69 = vmatpush1.msra.mxu0 0.0
    %70 = vmatprep.subr.mxu0 0.0
    %71 = vmatpush1.msra.mxu0 0.0
    %72 = vmatprep.subr.mxu0 0.0
    %73 = vmatpush1.msra.mxu0 0.0
    %74 = vmatprep.subr.mxu0 0.0
    %75 = vmatpush1.msra.mxu0 0.0
    %76 = vmatprep.subr.mxu0 0.0
    %77 = vmatpush1.msra.mxu0 0.0
    %78 = vmatprep.subr.mxu0 0.0
    %79 = vmatpush1.msra.mxu0 0.0
    %80 = vmatprep.subr.mxu0 0.0
    %81 = vmatpush1.msra.mxu0 0.0
    %82 = vmatprep.subr.mxu0 0.0
    %83 = vmatpush1.msra.mxu0 0.0
    %84 = vmatprep.subr.mxu0 0.0
    %85 = vmatpush1.msra.mxu0 0.0
    %86 = vmatprep.subr.mxu0 0.0
    %87 = vmatpush1.msra.mxu0 0.0
    %88 = vmatprep.subr.mxu0 0.0
    %89 = vmatpush1.msra.mxu0 0.0
    %90 = vmatprep.subr.mxu0 0.0
    %91 = vmatpush1.msra.mxu0 0.0
    %92 = vmatprep.subr.mxu0 0.0
    %93 = vmatpush1.msra.mxu0 0.0
    %94 = vmatprep.subr.mxu0 0.0
    %95 = vmatpush1.msra.mxu0 0.0
    %96 = vmatprep.subr.mxu0 0.0
    %97 = vmatpush1.msra.mxu0 0.0
    %98 = vmatprep.subr.mxu0 0.0
    %99 = vmatpush1.msra.mxu0 0.0
    %100 = vmatprep.subr.mxu0 0.0
    %101 = vmatpush1.msra.mxu0 0.0
    %102 = vmatprep.subr.mxu0 0.0
    %103 = vmatpush1.msra.mxu0 0.0
    %104 = vmatprep.subr.mxu0 0.0
    %105 = vmatpush1.msra.mxu0 0.0
    %106 = vmatprep.subr.mxu0 0.0
    %107 = vmatpush1.msra.mxu0 0.0
    %108 = vmatprep.subr.mxu0 0.0
    %109 = vmatpush1.msra.mxu0 0.0
    %110 = vmatprep.subr.mxu0 0.0
    %111 = vmatpush1.msra.mxu0 0.0
    %112 = vmatprep.subr.mxu0 0.0
    %113 = vmatpush1.msra.mxu0 0.0
    %114 = vmatprep.subr.mxu0 0.0
    %115 = vmatpush1.msra.mxu0 0.0
    %116 = vmatprep.subr.mxu0 0.0
    %117 = vmatpush1.msra.mxu0 0.0
    %118 = vmatprep.subr.mxu0 0.0
    %119 = vmatpush1.msra.mxu0 0.0
    %120 = vmatprep.mubr.f32.mxu0 0.0
    %121 = vmatmul.mubr.f32.gmra.mrb[0].mxu0 %v51
    %v122 = vpop.f32.mrb[0].mxu0
    %v123 = vadd.f32 %v42, %v122
    %v124 = vpop.f32.mrb[0].mxu0
    %v125 = vadd.f32 %v46, %v124
    %126 = vmatprep.mubr.f32.mxu0 0.0
    %127 = vmatmul.mubr.f32.gmra.mrb[0].mxu0 %v54
    %v128 = vpop.f32.mrb[0].mxu0
    %v129 = vadd.f32 %v42, %v128
    %v130 = vpop.f32.mrb[0].mxu0
    %v131 = vadd.f32 %v46, %v130
    %132 = vdwg.mxu0
    %v133 = vmax.f32 %v123, %v125
    %134 = vmax.xlane.f32.xlu0 %v133
    %v135 = vpop.xlane.xlu0 %134
    %v136 = vmax.f32 %v129, %v131
    %137 = vmax.xlane.f32.xlu0 %v136
    %v138 = vpop.xlane.xlu0 %137
    %v139 = vsub.f32 %v123, %v135
    %v140 = vsub.f32 %v125, %v135
    %v141 = vsub.f32 %v129, %v138
    %v142 = vsub.f32 %v131, %v138
    %v143 = vmul.f32 %v139, 1.442695
    %v144 = vpow.pop %v143
    %v145 = vmul.f32 %v140, 1.442695
    %v146 = vpow.pop %v145
    %v147 = vmul.f32 %v141, 1.442695
    %v148 = vpow.pop %v147
    %v149 = vmul.f32 %v142, 1.442695
    %v150 = vpow.pop %v149
    %v151 = vadd.f32 %v144, %v146
    %152 = vadd.xlane.f32.xlu0 %v151
    %v153 = vpop.xlane.xlu0 %152
    %v154 = vadd.f32 %v148, %v150
    %155 = vadd.xlane.f32.xlu0 %v154
    %v156 = vpop.xlane.xlu0 %155
    %v157 = vrcp.pop %v153
    %v158 = vmul.f32 1.0, %v157
    %v159 = vrcp.pop %v156
    %v160 = vmul.f32 1.0, %v159
    %v161 = vld [vmem:[%s3] sm:$0xff]
    %v162 = vld [vmem:[%s3 + $0x8] sm:$0xff]
    %v163 = vld [vmem:[%s3 + $0x10] sm:$0xff]
    %v164 = vld [vmem:[%s3 + $0x18] sm:$0xff]
    %v165 = vmul.f32 %v144, %v161
    %v166 = vmul.f32 %v146, %v162
    %v167 = vmul.f32 %v148, %v163
    %v168 = vmul.f32 %v150, %v164
    %v169 = vmul.f32 %v165, %v158
    %v170 = vmul.f32 %v166, %v158
    %v171 = vmul.f32 %v167, %v160
    %v172 = vmul.f32 %v168, %v160
    %v173 = vadd.f32 %v169, %v170
    %174 = vadd.xlane.f32.xlu0 %v173
    %v175 = vpop.xlane.xlu0 %174
    %v176 = vadd.f32 %v171, %v172
    %177 = vadd.xlane.f32.xlu0 %v176
    %v178 = vpop.xlane.xlu0 %177
    %v179 = vrot.slane %v175, 4
    %v180 = vadd.f32 %v175, %v179
    %v181 = vrot.slane %v180, 2
    %v182 = vadd.f32 %v180, %v181
    %v183 = vrot.slane %v182, 1
    %v184 = vadd.f32 %v182, %v183
    %v185 = vrot.slane %v178, 4
    %v186 = vadd.f32 %v178, %v185
    %v187 = vrot.slane %v186, 2
    %v188 = vadd.f32 %v186, %v187
    %v189 = vrot.slane %v188, 1
    %v190 = vadd.f32 %v188, %v189
    %v191 = vmax.f32 %v169, %v170
    %192 = vmax.xlane.f32.xlu0 %v191
    %v193 = vpop.xlane.xlu0 %192
    %v194 = vmax.f32 %v171, %v172
    %195 = vmax.xlane.f32.xlu0 %v194
    %v196 = vpop.xlane.xlu0 %195
    %v197 = vrot.slane %v193, 4
    %v198 = vmax.f32 %v193, %v197
    %v199 = vrot.slane %v198, 2
    %v200 = vmax.f32 %v198, %v199
    %v201 = vrot.slane %v200, 1
    %v202 = vmax.f32 %v200, %v201
    %v203 = vrot.slane %v196, 4
    %v204 = vmax.f32 %v196, %v203
    %v205 = vrot.slane %v204, 2
    %v206 = vmax.f32 %v204, %v205
    %v207 = vrot.slane %v206, 1
    %v208 = vmax.f32 %v206, %v207
    %v209 = vrcp.pop %v184
    %v210 = vmul.f32 1.0, %v209
    %v211 = vrcp.pop %v190
    %v212 = vmul.f32 1.0, %v211
    %v213 = vld [vmem:[%s4] sm:$0xff]
    %v214 = vld [vmem:[%s4 + $0x8] sm:$0xff]
    %v215 = vld [vmem:[%s4 + $0x10] sm:$0xff]
    %v216 = vld [vmem:[%s4 + $0x18] sm:$0xff]
    %v217 = vld [vmem:[%s4 + $0x20] sm:$0xff]
    %v218 = vld [vmem:[%s4 + $0x28] sm:$0xff]
    %v219 = vld [vmem:[%s4 + $0x30] sm:$0xff]
    %v220 = vld [vmem:[%s4 + $0x38] sm:$0xff]
    %v221 = vld [vmem:[%s4 + $0x40] sm:$0xff]
    %v222 = vld [vmem:[%s4 + $0x48] sm:$0xff]
    %v223 = vld [vmem:[%s4 + $0x50] sm:$0xff]
    %v224 = vld [vmem:[%s4 + $0x58] sm:$0xff]
    %v225 = vld [vmem:[%s4 + $0x60] sm:$0xff]
    %v226 = vld [vmem:[%s4 + $0x68] sm:$0xff]
    %v227 = vld [vmem:[%s4 + $0x70] sm:$0xff]
    %v228 = vld [vmem:[%s4 + $0x78] sm:$0xff]
    %v229 = vld [vmem:[%s4 + $0x80] sm:$0xff]
    %v230 = vld [vmem:[%s4 + $0x88] sm:$0xff]
    %v231 = vld [vmem:[%s4 + $0x90] sm:$0xff]
    %v232 = vld [vmem:[%s4 + $0x98] sm:$0xff]
    %v233 = vld [vmem:[%s4 + $0xa0] sm:$0xff]
    %v234 = vld [vmem:[%s4 + $0xa8] sm:$0xff]
    %v235 = vld [vmem:[%s4 + $0xb0] sm:$0xff]
    %v236 = vld [vmem:[%s4 + $0xb8] sm:$0xff]
    %v237 = vld [vmem:[%s4 + $0xc0] sm:$0xff]
    %v238 = vld [vmem:[%s4 + $0xc8] sm:$0xff]
    %v239 = vld [vmem:[%s4 + $0xd0] sm:$0xff]
    %v240 = vld [vmem:[%s4 + $0xd8] sm:$0xff]
    %v241 = vld [vmem:[%s4 + $0xe0] sm:$0xff]
    %v242 = vld [vmem:[%s4 + $0xe8] sm:$0xff]
    %v243 = vld [vmem:[%s4 + $0xf0] sm:$0xff]
    %v244 = vld [vmem:[%s4 + $0xf8] sm:$0xff]
    %245 = vmatprep.subr.mxu0 0.0
    %246 = vmatpush1.msra.mxu0 %v213
    %247 = vmatprep.subr.mxu0 0.0
    %248 = vmatpush1.msra.mxu0 %v214
    %249 = vmatprep.subr.mxu0 0.0
    %250 = vmatpush1.msra.mxu0 %v215
    %251 = vmatprep.subr.mxu0 0.0
    %252 = vmatpush1.msra.mxu0 %v216
    %253 = vmatprep.subr.mxu0 0.0
    %254 = vmatpush1.msra.mxu0 %v217
    %255 = vmatprep.subr.mxu0 0.0
    %256 = vmatpush1.msra.mxu0 %v218
    %257 = vmatprep.subr.mxu0 0.0
    %258 = vmatpush1.msra.mxu0 %v219
    %259 = vmatprep.subr.mxu0 0.0
    %260 = vmatpush1.msra.mxu0 %v220
    %261 = vmatprep.subr.mxu0 0.0
    %262 = vmatpush1.msra.mxu0 %v221
    %263 = vmatprep.subr.mxu0 0.0
    %264 = vmatpush1.msra.mxu0 %v222
    %265 = vmatprep.subr.mxu0 0.0
    %266 = vmatpush1.msra.mxu0 %v223
    %267 = vmatprep.subr.mxu0 0.0
    %268 = vmatpush1.msra.mxu0 %v224
    %269 = vmatprep.subr.mxu0 0.0
    %270 = vmatpush1.msra.mxu0 %v225
    %271 = vmatprep.subr.mxu0 0.0
    %272 = vmatpush1.msra.mxu0 %v226
    %273 = vmatprep.subr.mxu0 0.0
    %274 = vmatpush1.msra.mxu0 %v227
    %275 = vmatprep.subr.mxu0 0.0
    %276 = vmatpush1.msra.mxu0 %v228
    %277 = vmatprep.subr.mxu0 0.0
    %278 = vmatpush1.msra.mxu0 %v229
    %279 = vmatprep.subr.mxu0 0.0
    %280 = vmatpush1.msra.mxu0 %v230
    %281 = vmatprep.subr.mxu0 0.0
    %282 = vmatpush1.msra.mxu0 %v231
    %283 = vmatprep.subr.mxu0 0.0
    %284 = vmatpush1.msra.mxu0 %v232
    %285 = vmatprep.subr.mxu0 0.0
    %286 = vmatpush1.msra.mxu0 %v233
    %287 = vmatprep.subr.mxu0 0.0
    %288 = vmatpush1.msra.mxu0 %v234
    %289 = vmatprep.subr.mxu0 0.0
    %290 = vmatpush1.msra.mxu0 %v235
    %291 = vmatprep.subr.mxu0 0.0
    %292 = vmatpush1.msra.mxu0 %v236
    %293 = vmatprep.subr.mxu0 0.0
    %294 = vmatpush1.msra.mxu0 %v237
    %295 = vmatprep.subr.mxu0 0.0
    %296 = vmatpush1.msra.mxu0 %v238
    %297 = vmatprep.subr.mxu0 0.0
    %298 = vmatpush1.msra.mxu0 %v239
    %299 = vmatprep.subr.mxu0 0.0
    %300 = vmatpush1.msra.mxu0 %v240
    %301 = vmatprep.subr.mxu0 0.0
    %302 = vmatpush1.msra.mxu0 %v241
    %303 = vmatprep.subr.mxu0 0.0
    %304 = vmatpush1.msra.mxu0 %v242
    %305 = vmatprep.subr.mxu0 0.0
    %306 = vmatpush1.msra.mxu0 %v243
    %307 = vmatprep.subr.mxu0 0.0
    %308 = vmatpush1.msra.mxu0 %v244
    %309 = vmatprep.mubr.f32.mxu0 %v170
    %310 = vmatmul.mubr.f32.gmra.mrb[0].mxu0 %v169
    %v311 = vpop.f32.mrb[0].mxu0
    %v312 = vadd.f32 0.0, %v311
    %v313 = vpop.f32.mrb[0].mxu0
    %314 = vmatprep.mubr.f32.mxu0 %v172
    %315 = vmatmul.mubr.f32.gmra.mrb[0].mxu0 %v171
    %v316 = vpop.f32.mrb[0].mxu0
    %v317 = vadd.f32 0.0, %v316
    %v318 = vpop.f32.mrb[0].mxu0
    %319 = vdwg.mxu0
    %v320 = vmul.f32 %v312, %v210
    %v321 = vmul.f32 %v317, %v212
    %v322 = vld [vmem:[%s5] sm:$0x1]
    %v324 = vlaneseq
    %v325 = vshrl.u32 %v324, 7
    %v326 = vsub.s32 0, %v325
    %v327 = vrot.slane %v322, %v326
    %v329 = vadd.f32 %v320, %v327
    %v330 = vadd.f32 %v321, %v327
    %331 = vst.msk [vmem:[#allocation2] sm:$0xff] %vm49, %v329
    %332 = vst.msk [vmem:[#allocation2 + $0x8] sm:$0xff] %vm49, %v330
    %v333 = vmul.f32 %v202, %v210
    %v334 = vmul.f32 %v208, %v212
    %v335 = vmax.f32 %v333, %v334
    %vm336 = vcmask 0
    %337 = vst.msk [vmem:[#allocation4] sm:$0x1] %vm336, %v335
    // Predicated region
    $region26: #{tpu_custom_call.1} parent=1 // pred_check
      _
    $region27: #{tpu_custom_call.1} parent=1 // pred_check_branch
      %339 = sbr.rel (0) target = $region29
    $region28: #{tpu_custom_call.1} parent=1 // pred_region
      %s341 = ssub.s32 256, 256
      %342 = vsyncadd [#allocation3], %s341
      %s343 = sshll.u32 [#allocation2], 4
      %s344 = int_to_ptr.vmem [resolvable:$true] %s343
      %349 = dma.vmem_to_hbm [thread:$0]  %s344, 256, %s6, [#allocation3], 128, 128, 8
    $region29: #{tpu_custom_call.1} parent=1 // pred_fallthru
      _
    // Predicated region
    $region30: #{tpu_custom_call.1} parent=1 // pred_check
      _
    $region31: #{tpu_custom_call.1} parent=1 // pred_check_branch
      %351 = sbr.rel (0) target = $region33
    $region32: #{tpu_custom_call.1} parent=1 // pred_region
      %s353 = ssub.s32 16, 16
      %354 = vsyncadd [#allocation5], %s353
      %s356 = sshll.u32 [#allocation4], 4
      %s357 = int_to_ptr.vmem [resolvable:$true] %s356
      %359 = dma.vmem_to_hbm [thread:$0]  %s357, 16, %s7, [#allocation5]
    $region33: #{tpu_custom_call.1} parent=1 // pred_fallthru
      _
    // Predicated region
    $region34: #{tpu_custom_call.1} parent=1 // pred_check
      _
    $region35: #{tpu_custom_call.1} parent=1 // pred_check_branch
      %361 = sbr.rel (0) target = $region37
    $region36: #{tpu_custom_call.1} parent=1 // pred_region
      %362 = dma.done [#allocation3], 256
    $region37: #{tpu_custom_call.1} parent=1 // pred_fallthru
      _
    // Predicated region
    $region38: #{tpu_custom_call.1} parent=1 // pred_check
      _
    $region39: #{tpu_custom_call.1} parent=1 // pred_check_branch
      %364 = sbr.rel (0) target = $region41
    $region40: #{tpu_custom_call.1} parent=1 // pred_region
      %365 = dma.done [#allocation5], 16
    $region41: #{tpu_custom_call.1} parent=1 // pred_fallthru
      _
    %366 = vsyncpa [#allocation3], 1
    %367 = vsyncpa [#allocation5], 1

</llo_original>
